<compile_context>
chip_gen: v5e
topology: v5e:2x2
jax: 0.10.0
libtpu: 0.0.40
codegen_flags: <defaults>
</compile_context>

<pallas_src>
import functools
import math

import jax
import jax.numpy as jnp
from jax.experimental import pallas as pl
from jax.experimental.pallas import tpu as pltpu  # noqa: F401  (TPU backend assumed)

_MIN_NORMAL_F32 = 1.1754944e-38          # smallest normal float32 (survives FTZ)
_LOG_CLAMP = math.log(1e-40)             # PyTorch's clamp floor, ~= -92.1034


def ensemble_kernel(x_ref, w1_ref, b1_ref, w2_ref, b2_ref, out_ref, *,
                    num_models, hidden, ensemble):
    """Single-invocation fused ensemble forward.

    x_ref:  (B, D)        bf16
    w1_ref: (D, Hp)       bf16   fused+padded first-layer weights (Hp >= M*H)
    b1_ref: (1, Hp)       f32    fused+padded first-layer bias
    w2_ref: (M, H, C)     bf16
    b2_ref: (M, 1, C)     f32
    out_ref: (B, C) if ensemble else (M, B, C), f32
    """
    # Fused first layer: one lane-dense MXU stream for all models (f32 accum).
    x = x_ref[...]                                                     # (B, D) bf16
    h_all = jnp.dot(x, w1_ref[...], preferred_element_type=jnp.float32)  # (B, Hp) f32
    h_all = jnp.maximum(h_all + b1_ref[...], 0.0)                      # bias + ReLU in f32

    acc = None
    # Static unroll over the (small) model axis — no grid, no per-step overhead.
    for m in range(num_models):
        h_m = h_all[:, m * hidden:(m + 1) * hidden]                    # (B, H) lane slice
        logits = jnp.dot(h_m.astype(jnp.bfloat16), w2_ref[m],
                         preferred_element_type=jnp.float32) + b2_ref[m]  # (B, C) f32

        if ensemble:
            # softmax over classes (f32); divide moved to the EUP slot.
            z = logits - jnp.max(logits, axis=-1, keepdims=True)
            e = jnp.exp(z)
            denom = jnp.sum(e, axis=-1, keepdims=True)
            p = e * pl.reciprocal(denom, approx=True)
            acc = p if acc is None else acc + p
        else:
            out_ref[m] = logits.astype(out_ref.dtype)                  # one write per model

    if ensemble:
        mean_p = acc * (1.0 / num_models)
        # Emulate torch.clamp(min=1e-40) despite TPU flush-to-zero of subnormals:
        # values below the smallest normal f32 get the exact PyTorch floor log(1e-40).
        safe = jnp.maximum(mean_p, _MIN_NORMAL_F32)
        out_ref[...] = jnp.where(mean_p >= _MIN_NORMAL_F32,
                                 jnp.log(safe),
                                 jnp.float32(_LOG_CLAMP)).astype(out_ref.dtype)


def prepare_params(params):
    """One-time layout/dtype prep (host side): fuse first layer, cast weights to bf16."""
    W1, b1, W2, b2 = params["W1"], params["b1"], params["W2"], params["b2"]
    M, D, H = W1.shape
    C = W2.shape[-1]
    MH = M * H
    Hp = ((MH + 127) // 128) * 128                 # pad fused lanes to a 128 multiple

    # (M, D, H) -> (D, M*H): lane index m*H + h holds W1[m, :, h].
    W1f = jnp.transpose(W1, (1, 0, 2)).reshape(D, MH)
    b1f = b1.reshape(1, MH)
    if Hp != MH:
        W1f = jnp.pad(W1f, ((0, 0), (0, Hp - MH)))
        b1f = jnp.pad(b1f, ((0, 0), (0, Hp - MH)))

    return {
        "W1f": W1f.astype(jnp.bfloat16),           # (D, Hp)  bf16
        "b1f": b1f.astype(jnp.float32),            # (1, Hp)  f32
        "W2": W2.astype(jnp.bfloat16),             # (M, H, C) bf16
        "b2": b2.reshape(M, 1, C).astype(jnp.float32),  # (M, 1, C) f32
        "meta": (M, D, H, C),
    }


def ensemble_forward(x_nchw, prepared, ensemble=True):
    """Run the fused ensemble kernel. `prepared` comes from prepare_params()."""
    M, D, H, C = prepared["meta"]
    B = x_nchw.shape[0]
    x_flat = x_nchw.reshape(B, -1).astype(jnp.bfloat16)       # (B, D) bf16 (halved DMA)

    if ensemble:
        out_shape = jax.ShapeDtypeStruct((B, C), jnp.float32)        # log(mean softmax)
    else:
        out_shape = jax.ShapeDtypeStruct((M, B, C), jnp.float32)     # stacked logits

    kernel = functools.partial(ensemble_kernel, num_models=M, hidden=H,
                               ensemble=ensemble)

    # No grid: full-array blocks; whole problem fits easily in VMEM on all
    # generations (fused bf16 W1 tile = D*Hp*2 bytes = 256 KiB at these sizes).
    return pl.pallas_call(
        kernel,
        out_shape=out_shape,
    )(x_flat, prepared["W1f"], prepared["b1f"], prepared["W2"], prepared["b2"])


def init_params(key, num_models, in_dim, hidden, num_classes):
    k1, k2, k3, k4 = jax.random.split(key, 4)
    W1 = 0.05 * jax.random.normal(k1, (num_models, in_dim, hidden), jnp.float32)
    b1 = 0.01 * jax.random.normal(k2, (num_models, hidden), jnp.float32)
    W2 = 0.05 * jax.random.normal(k3, (num_models, hidden, num_classes), jnp.float32)
    b2 = 0.01 * jax.random.normal(k4, (num_models, num_classes), jnp.float32)
    return {"W1": W1, "b1": b1, "W2": W2, "b2": b2}


def reference_forward(x_nchw, params, ensemble=True):
    """Pure-JAX f32 reference mirroring the PyTorch module."""
    B = x_nchw.shape[0]
    xf = x_nchw.reshape(B, -1).astype(jnp.float32)
    outs = []
    for m in range(params["W1"].shape[0]):
        h = jnp.maximum(
            jnp.dot(xf, params["W1"][m], precision=jax.lax.Precision.HIGHEST)
            + params["b1"][m], 0.0)
        outs.append(
            jnp.dot(h, params["W2"][m], precision=jax.lax.Precision.HIGHEST)
            + params["b2"][m])
    stacked = jnp.stack(outs, axis=0)
    if not ensemble:
        return stacked
    probs = jax.nn.softmax(stacked, axis=-1).mean(axis=0)
    return jnp.log(jnp.clip(probs, 1e-40))


if __name__ == "__main__":
    key = jax.random.PRNGKey(0)
    kx, kp = jax.random.split(key)

    # Small shapes: batch=2, channels=4, spatial=16x16, hidden=32, classes=10, models=3
    B, Cin, Hsp, Wsp = 2, 4, 16, 16
    hidden, num_classes, num_models = 32, 10, 3
    in_dim = Cin * Hsp * Wsp

    x = jax.random.normal(kx, (B, Cin, Hsp, Wsp), jnp.float32)   # NCHW like PyTorch
    params = init_params(kp, num_models, in_dim, hidden, num_classes)
    prepared = prepare_params(params)

    out_ens = ensemble_forward(x, prepared, ensemble=True)
    out_stack = ensemble_forward(x, prepared, ensemble=False)
    jax.block_until_ready((out_ens, out_stack))

    ref_ens = reference_forward(x, params, ensemble=True)
    ref_stack = reference_forward(x, params, ensemble=False)

    assert out_ens.shape == (B, num_classes)
    assert out_stack.shape == (num_models, B, num_classes)
    # bf16 matmul inputs (f32 accumulation) => relaxed tolerance vs. the f32 reference.
    assert jnp.allclose(out_ens, ref_ens, atol=3e-2, rtol=3e-2), (
        float(jnp.max(jnp.abs(out_ens - ref_ens))))
    assert jnp.allclose(out_stack, ref_stack, atol=3e-2, rtol=3e-2), (
        float(jnp.max(jnp.abs(out_stack - ref_stack))))

    print("KERNEL_OK")
</pallas_src>

<mosaic_0001>
module attributes {stable_mosaic.version = 11 : i64} {
  func.func @ensemble_kernel(%arg0: memref<2x1024xbf16, #tpu.memory_space<vmem>>, %arg1: memref<1024x128xbf16, #tpu.memory_space<vmem>>, %arg2: memref<1x128xf32, #tpu.memory_space<vmem>>, %arg3: memref<3x32x10xbf16, #tpu.memory_space<vmem>>, %arg4: memref<3x1x10xf32, #tpu.memory_space<vmem>>, %arg5: memref<2x10xf32, #tpu.memory_space<vmem>>) attributes {dimension_semantics = [], scalar_prefetch = 0 : i64, scratch_operands = 0 : i64, tpu.core_type = #tpu.core_type<tc>} {
    %c0 = arith.constant 0 : index
    %c0_0 = arith.constant 0 : index
    %0 = vector.load %arg0[%c0, %c0_0] : memref<2x1024xbf16, #tpu.memory_space<vmem>>, vector<2x1024xbf16>
    %c0_1 = arith.constant 0 : index
    %c0_2 = arith.constant 0 : index
    %1 = vector.load %arg1[%c0_1, %c0_2] : memref<1024x128xbf16, #tpu.memory_space<vmem>>, vector<1024x128xbf16>
    %cst = arith.constant dense<0.000000e+00> : vector<2x128xf32>
    %2 = tpu.matmul %0, %1, %cst {dimension_numbers = #tpu.dot_dimension_numbers<[1], [0], [0], [1], [0, 0, 1, 1], [], []>} : vector<2x1024xbf16>, vector<1024x128xbf16>, vector<2x128xf32> -> vector<2x128xf32>
    %c0_3 = arith.constant 0 : index
    %c0_4 = arith.constant 0 : index
    %3 = vector.load %arg2[%c0_3, %c0_4] : memref<1x128xf32, #tpu.memory_space<vmem>>, vector<1x128xf32>
    %4 = vector.broadcast %3 : vector<1x128xf32> to vector<2x128xf32>
    %5 = arith.addf %2, %4 : vector<2x128xf32>
    %cst_5 = arith.constant 0.000000e+00 : f32
    %6 = vector.broadcast %cst_5 : f32 to vector<2x128xf32>
    %7 = arith.maximumf %5, %6 : vector<2x128xf32>
    %8 = vector.extract_strided_slice %7 {offsets = [0, 0], sizes = [2, 32], strides = [1, 1]} : vector<2x128xf32> to vector<2x32xf32>
    %9 = arith.truncf %8 : vector<2x32xf32> to vector<2x32xbf16>
    %c0_6 = arith.constant 0 : index
    %c0_7 = arith.constant 0 : index
    %c0_8 = arith.constant 0 : index
    %10 = vector.load %arg3[%c0_6, %c0_7, %c0_8] : memref<3x32x10xbf16, #tpu.memory_space<vmem>>, vector<1x32x10xbf16>
    %11 = vector.shape_cast %10 : vector<1x32x10xbf16> to vector<32x10xbf16>
    %cst_9 = arith.constant dense<0.000000e+00> : vector<2x10xf32>
    %12 = tpu.matmul %9, %11, %cst_9 {dimension_numbers = #tpu.dot_dimension_numbers<[1], [0], [0], [1], [0, 0, 1, 1], [], []>} : vector<2x32xbf16>, vector<32x10xbf16>, vector<2x10xf32> -> vector<2x10xf32>
    %c0_10 = arith.constant 0 : index
    %c0_11 = arith.constant 0 : index
    %c0_12 = arith.constant 0 : index
    %13 = vector.load %arg4[%c0_10, %c0_11, %c0_12] : memref<3x1x10xf32, #tpu.memory_space<vmem>>, vector<1x1x10xf32>
    %14 = vector.shape_cast %13 : vector<1x1x10xf32> to vector<1x10xf32>
    %15 = vector.broadcast %14 : vector<1x10xf32> to vector<2x10xf32>
    %16 = arith.addf %12, %15 : vector<2x10xf32>
    %cst_13 = arith.constant dense<0xFF800000> : vector<2xf32>
    %17 = vector.multi_reduction <maximumf>, %16, %cst_13 [1] : vector<2x10xf32> to vector<2xf32>
    %18 = vector.shape_cast %17 : vector<2xf32> to vector<2x1xf32>
    %19 = vector.broadcast %18 : vector<2x1xf32> to vector<2x10xf32>
    %20 = arith.subf %16, %19 : vector<2x10xf32>
    %21 = math.exp %20 : vector<2x10xf32>
    %cst_14 = arith.constant dense<0.000000e+00> : vector<2xf32>
    %22 = vector.multi_reduction <add>, %21, %cst_14 [1] : vector<2x10xf32> to vector<2xf32>
    %23 = vector.shape_cast %22 : vector<2xf32> to vector<2x1xf32>
    %24 = tpu.reciprocal %23 {approx = true} : vector<2x1xf32> -> vector<2x1xf32>
    %25 = vector.broadcast %24 : vector<2x1xf32> to vector<2x10xf32>
    %26 = arith.mulf %21, %25 : vector<2x10xf32>
    %27 = vector.extract_strided_slice %7 {offsets = [0, 32], sizes = [2, 32], strides = [1, 1]} : vector<2x128xf32> to vector<2x32xf32>
    %28 = arith.truncf %27 : vector<2x32xf32> to vector<2x32xbf16>
    %c1 = arith.constant 1 : index
    %c0_15 = arith.constant 0 : index
    %c0_16 = arith.constant 0 : index
    %29 = vector.load %arg3[%c1, %c0_15, %c0_16] : memref<3x32x10xbf16, #tpu.memory_space<vmem>>, vector<1x32x10xbf16>
    %30 = vector.shape_cast %29 : vector<1x32x10xbf16> to vector<32x10xbf16>
    %cst_17 = arith.constant dense<0.000000e+00> : vector<2x10xf32>
    %31 = tpu.matmul %28, %30, %cst_17 {dimension_numbers = #tpu.dot_dimension_numbers<[1], [0], [0], [1], [0, 0, 1, 1], [], []>} : vector<2x32xbf16>, vector<32x10xbf16>, vector<2x10xf32> -> vector<2x10xf32>
    %c1_18 = arith.constant 1 : index
    %c0_19 = arith.constant 0 : index
    %c0_20 = arith.constant 0 : index
    %32 = vector.load %arg4[%c1_18, %c0_19, %c0_20] : memref<3x1x10xf32, #tpu.memory_space<vmem>>, vector<1x1x10xf32>
    %33 = vector.shape_cast %32 : vector<1x1x10xf32> to vector<1x10xf32>
    %34 = vector.broadcast %33 : vector<1x10xf32> to vector<2x10xf32>
    %35 = arith.addf %31, %34 : vector<2x10xf32>
    %cst_21 = arith.constant dense<0xFF800000> : vector<2xf32>
    %36 = vector.multi_reduction <maximumf>, %35, %cst_21 [1] : vector<2x10xf32> to vector<2xf32>
    %37 = vector.shape_cast %36 : vector<2xf32> to vector<2x1xf32>
    %38 = vector.broadcast %37 : vector<2x1xf32> to vector<2x10xf32>
    %39 = arith.subf %35, %38 : vector<2x10xf32>
    %40 = math.exp %39 : vector<2x10xf32>
    %cst_22 = arith.constant dense<0.000000e+00> : vector<2xf32>
    %41 = vector.multi_reduction <add>, %40, %cst_22 [1] : vector<2x10xf32> to vector<2xf32>
    %42 = vector.shape_cast %41 : vector<2xf32> to vector<2x1xf32>
    %43 = tpu.reciprocal %42 {approx = true} : vector<2x1xf32> -> vector<2x1xf32>
    %44 = vector.broadcast %43 : vector<2x1xf32> to vector<2x10xf32>
    %45 = arith.mulf %40, %44 : vector<2x10xf32>
    %46 = arith.addf %26, %45 : vector<2x10xf32>
    %47 = vector.extract_strided_slice %7 {offsets = [0, 64], sizes = [2, 32], strides = [1, 1]} : vector<2x128xf32> to vector<2x32xf32>
    %48 = arith.truncf %47 : vector<2x32xf32> to vector<2x32xbf16>
    %c2 = arith.constant 2 : index
    %c0_23 = arith.constant 0 : index
    %c0_24 = arith.constant 0 : index
    %49 = vector.load %arg3[%c2, %c0_23, %c0_24] : memref<3x32x10xbf16, #tpu.memory_space<vmem>>, vector<1x32x10xbf16>
    %50 = vector.shape_cast %49 : vector<1x32x10xbf16> to vector<32x10xbf16>
    %cst_25 = arith.constant dense<0.000000e+00> : vector<2x10xf32>
    %51 = tpu.matmul %48, %50, %cst_25 {dimension_numbers = #tpu.dot_dimension_numbers<[1], [0], [0], [1], [0, 0, 1, 1], [], []>} : vector<2x32xbf16>, vector<32x10xbf16>, vector<2x10xf32> -> vector<2x10xf32>
    %c2_26 = arith.constant 2 : index
    %c0_27 = arith.constant 0 : index
    %c0_28 = arith.constant 0 : index
    %52 = vector.load %arg4[%c2_26, %c0_27, %c0_28] : memref<3x1x10xf32, #tpu.memory_space<vmem>>, vector<1x1x10xf32>
    %53 = vector.shape_cast %52 : vector<1x1x10xf32> to vector<1x10xf32>
    %54 = vector.broadcast %53 : vector<1x10xf32> to vector<2x10xf32>
    %55 = arith.addf %51, %54 : vector<2x10xf32>
    %cst_29 = arith.constant dense<0xFF800000> : vector<2xf32>
    %56 = vector.multi_reduction <maximumf>, %55, %cst_29 [1] : vector<2x10xf32> to vector<2xf32>
    %57 = vector.shape_cast %56 : vector<2xf32> to vector<2x1xf32>
    %58 = vector.broadcast %57 : vector<2x1xf32> to vector<2x10xf32>
    %59 = arith.subf %55, %58 : vector<2x10xf32>
    %60 = math.exp %59 : vector<2x10xf32>
    %cst_30 = arith.constant dense<0.000000e+00> : vector<2xf32>
    %61 = vector.multi_reduction <add>, %60, %cst_30 [1] : vector<2x10xf32> to vector<2xf32>
    %62 = vector.shape_cast %61 : vector<2xf32> to vector<2x1xf32>
    %63 = tpu.reciprocal %62 {approx = true} : vector<2x1xf32> -> vector<2x1xf32>
    %64 = vector.broadcast %63 : vector<2x1xf32> to vector<2x10xf32>
    %65 = arith.mulf %60, %64 : vector<2x10xf32>
    %66 = arith.addf %46, %65 : vector<2x10xf32>
    %cst_31 = arith.constant 0.333333343 : f32
    %67 = vector.broadcast %cst_31 : f32 to vector<2x10xf32>
    %68 = arith.mulf %66, %67 : vector<2x10xf32>
    %cst_32 = arith.constant 1.17549435E-38 : f32
    %69 = vector.broadcast %cst_32 : f32 to vector<2x10xf32>
    %70 = arith.maximumf %68, %69 : vector<2x10xf32>
    %cst_33 = arith.constant 1.17549435E-38 : f32
    %71 = vector.broadcast %cst_33 : f32 to vector<2x10xf32>
    %72 = arith.cmpf oge, %68, %71 : vector<2x10xf32>
    %73 = math.log %70 : vector<2x10xf32>
    %cst_34 = arith.constant -9.210340e+01 : f32
    %74 = vector.broadcast %cst_34 : f32 to vector<2x10xf32>
    %75 = arith.select %72, %73, %74 : vector<2x10xi1>, vector<2x10xf32>
    %c0_35 = arith.constant 0 : index
    %c0_36 = arith.constant 0 : index
    %76 = vector.load %arg5[%c0_35, %c0_36] : memref<2x10xf32, #tpu.memory_space<vmem>>, vector<2x10xf32>
    tpu.vector_store %arg5[%c0_35, %c0_36], %75 {strides = array<i32>} : memref<2x10xf32, #tpu.memory_space<vmem>>, vector<2x10xf32>,
    return
  }
}

</mosaic_0001>

<llo_original>
// kernel: tpu_custom_call.1
$region0: #{tpu_custom_call.1}
  #allocation0 [shape = 'u32[]', space=smem, size = 0x4, offset = 0x4, fixed_abs, tag = 'smem constant byte address 0x4 - core index']
  #allocation1 [shape = 'u32[72,128]{1,0:T(1,128)}', space=vmem, size = 0x9000, scoped, tag = 'internal scratch']
  %s0 = inlined_call_operand.vmem [shape: bf16[2,1024], index: 0, kind: input, shape index: {}]
  %s1 = inlined_call_operand.hbm [shape: bf16[1024,128], index: 1, kind: input, shape index: {}]
  %s2 = inlined_call_operand.vmem [shape: f32[1,128], index: 2, kind: input, shape index: {}]
  %s3 = inlined_call_operand.vmem [shape: bf16[3,32,10], index: 3, kind: input, shape index: {}]
  %s4 = inlined_call_operand.vmem [shape: f32[3,1,10], index: 4, kind: input, shape index: {}]
  %s5 = inlined_call_operand.hbm [shape: f32[2,10], index: 5, kind: output, shape index: {}]
  %s6 = sld [smem:[#allocation0]]
  $region34: #{tpu_custom_call.1} parent=0
    _
  %s8 = ssub.s32 1, %s6
  %s9 = scalar_select 0, %s8, %s6
  $region1: #{tpu_custom_call.1} parent=0
    #allocation2 [shape = 'u8[262144]{0}', space=vmem, size = 0x40000, scoped, tag = 'input window, operand 1, single buffered']
    #allocation3 [shape = 's32[1]{0}', space=sflag, size = 0x4, scoped, tag = 'scoped memory for tpu_custom_call.1']
    #allocation4 [shape = 's32[1]{0}', space=sflag, size = 0x4, scoped, tag = 'scoped memory for tpu_custom_call.1']
    #allocation5 [shape = 'u8[1024]{0}', space=vmem, size = 0x400, scoped, tag = 'output window, operand 0, single buffered']
    %10 = vsyncpa [#allocation3], 0
    %11 = vsyncpa [#allocation4], 0
    // Predicated region
    $region2: #{tpu_custom_call.1} parent=1 // pred_check
      _
    $region3: #{tpu_custom_call.1} parent=1 // pred_check_branch
      %13 = sbr.rel (0) target = $region5
    $region4: #{tpu_custom_call.1} parent=1 // pred_region
      _
    $region5: #{tpu_custom_call.1} parent=1 // pred_fallthru
      _
    // Predicated region
    $region6: #{tpu_custom_call.1} parent=1 // pred_check
      _
    $region7: #{tpu_custom_call.1} parent=1 // pred_check_branch
      %15 = sbr.rel (0) target = $region9
    $region8: #{tpu_custom_call.1} parent=1 // pred_region
      %17 = vsyncadd [#allocation3], 0
      %s18 = sshll.u32 %s1, 4
      %s19 = int_to_ptr.hbm [resolvable:$true] %s18
      %s20 = sshll.u32 [#allocation2], 4
      %s21 = int_to_ptr.vmem [resolvable:$true] %s20
      %26 = dma.hbm_to_vmem [thread:$0]  %s19, 8192, %s21, [#allocation3], 64, 64, 4
    $region9: #{tpu_custom_call.1} parent=1 // pred_fallthru
      _
    // Predicated region
    $region10: #{tpu_custom_call.1} parent=1 // pred_check
      _
    $region11: #{tpu_custom_call.1} parent=1 // pred_check_branch
      %28 = sbr.rel (0) target = $region13
    $region12: #{tpu_custom_call.1} parent=1 // pred_region
      _
    $region13: #{tpu_custom_call.1} parent=1 // pred_fallthru
      _
    // Predicated region
    $region14: #{tpu_custom_call.1} parent=1 // pred_check
      _
    $region15: #{tpu_custom_call.1} parent=1 // pred_check_branch
      %30 = sbr.rel (0) target = $region17
    $region16: #{tpu_custom_call.1} parent=1 // pred_region
      _
    $region17: #{tpu_custom_call.1} parent=1 // pred_fallthru
      _
    // Predicated region
    $region18: #{tpu_custom_call.1} parent=1 // pred_check
      _
    $region19: #{tpu_custom_call.1} parent=1 // pred_check_branch
      %32 = sbr.rel (0) target = $region21
    $region20: #{tpu_custom_call.1} parent=1 // pred_region
      _
    $region21: #{tpu_custom_call.1} parent=1 // pred_fallthru
      _
    // Predicated region
    $region22: #{tpu_custom_call.1} parent=1 // pred_check
      _
    $region23: #{tpu_custom_call.1} parent=1 // pred_check_branch
      %34 = sbr.rel (0) target = $region25
    $region24: #{tpu_custom_call.1} parent=1 // pred_region
      %36 = dma.done [#allocation3], 8192
    $region25: #{tpu_custom_call.1} parent=1 // pred_fallthru
      _
    %v38 = vld [vmem:[%s0] sm:$0xff]
    %v39 = vld [vmem:[#allocation2] sm:$0xf]
    %v40 = vld [vmem:[#allocation2 + $0x4] sm:$0xf]
    %v41 = vld [vmem:[#allocation2 + $0x8] sm:$0xf]
    %v42 = vld [vmem:[#allocation2 + $0xc] sm:$0xf]
    %v43 = vld [vmem:[#allocation2 + $0x10] sm:$0xf]
    %v44 = vld [vmem:[#allocation2 + $0x14] sm:$0xf]
    %v45 = vld [vmem:[#allocation2 + $0x18] sm:$0xf]
    %v46 = vld [vmem:[#allocation2 + $0x1c] sm:$0xf]
    %v47 = vld [vmem:[#allocation2 + $0x20] sm:$0xf]
    %v48 = vld [vmem:[#allocation2 + $0x24] sm:$0xf]
    %v49 = vld [vmem:[#allocation2 + $0x28] sm:$0xf]
    %v50 = vld [vmem:[#allocation2 + $0x2c] sm:$0xf]
    %v51 = vld [vmem:[#allocation2 + $0x30] sm:$0xf]
    %v52 = vld [vmem:[#allocation2 + $0x34] sm:$0xf]
    %v53 = vld [vmem:[#allocation2 + $0x38] sm:$0xf]
    %v54 = vld [vmem:[#allocation2 + $0x3c] sm:$0xf]
    %v55 = vld [vmem:[#allocation2 + $0x40] sm:$0xf]
    %v56 = vld [vmem:[#allocation2 + $0x44] sm:$0xf]
    %v57 = vld [vmem:[#allocation2 + $0x48] sm:$0xf]
    %v58 = vld [vmem:[#allocation2 + $0x4c] sm:$0xf]
    %v59 = vld [vmem:[#allocation2 + $0x50] sm:$0xf]
    %v60 = vld [vmem:[#allocation2 + $0x54] sm:$0xf]
    %v61 = vld [vmem:[#allocation2 + $0x58] sm:$0xf]
    %v62 = vld [vmem:[#allocation2 + $0x5c] sm:$0xf]
    %v63 = vld [vmem:[#allocation2 + $0x60] sm:$0xf]
    %v64 = vld [vmem:[#allocation2 + $0x64] sm:$0xf]
    %v65 = vld [vmem:[#allocation2 + $0x68] sm:$0xf]
    %v66 = vld [vmem:[#allocation2 + $0x6c] sm:$0xf]
    %v67 = vld [vmem:[#allocation2 + $0x70] sm:$0xf]
    %v68 = vld [vmem:[#allocation2 + $0x74] sm:$0xf]
    %v69 = vld [vmem:[#allocation2 + $0x78] sm:$0xf]
    %v70 = vld [vmem:[#allocation2 + $0x7c] sm:$0xf]
    %v71 = vld [vmem:[#allocation2 + $0x80] sm:$0xf]
    %v72 = vld [vmem:[#allocation2 + $0x84] sm:$0xf]
    %v73 = vld [vmem:[#allocation2 + $0x88] sm:$0xf]
    %v74 = vld [vmem:[#allocation2 + $0x8c] sm:$0xf]
    %v75 = vld [vmem:[#allocation2 + $0x90] sm:$0xf]
    %v76 = vld [vmem:[#allocation2 + $0x94] sm:$0xf]
    %v77 = vld [vmem:[#allocation2 + $0x98] sm:$0xf]
    %v78 = vld [vmem:[#allocation2 + $0x9c] sm:$0xf]
    %v79 = vld [vmem:[#allocation2 + $0xa0] sm:$0xf]
    %v80 = vld [vmem:[#allocation2 + $0xa4] sm:$0xf]
    %v81 = vld [vmem:[#allocation2 + $0xa8] sm:$0xf]
    %v82 = vld [vmem:[#allocation2 + $0xac] sm:$0xf]
    %v83 = vld [vmem:[#allocation2 + $0xb0] sm:$0xf]
    %v84 = vld [vmem:[#allocation2 + $0xb4] sm:$0xf]
    %v85 = vld [vmem:[#allocation2 + $0xb8] sm:$0xf]
    %v86 = vld [vmem:[#allocation2 + $0xbc] sm:$0xf]
    %v87 = vld [vmem:[#allocation2 + $0xc0] sm:$0xf]
    %v88 = vld [vmem:[#allocation2 + $0xc4] sm:$0xf]
    %v89 = vld [vmem:[#allocation2 + $0xc8] sm:$0xf]
    %v90 = vld [vmem:[#allocation2 + $0xcc] sm:$0xf]
    %v91 = vld [vmem:[#allocation2 + $0xd0] sm:$0xf]
    %v92 = vld [vmem:[#allocation2 + $0xd4] sm:$0xf]
    %v93 = vld [vmem:[#allocation2 + $0xd8] sm:$0xf]
    %v94 = vld [vmem:[#allocation2 + $0xdc] sm:$0xf]
    %v95 = vld [vmem:[#allocation2 + $0xe0] sm:$0xf]
    %v96 = vld [vmem:[#allocation2 + $0xe4] sm:$0xf]
    %v97 = vld [vmem:[#allocation2 + $0xe8] sm:$0xf]
    %v98 = vld [vmem:[#allocation2 + $0xec] sm:$0xf]
    %v99 = vld [vmem:[#allocation2 + $0xf0] sm:$0xf]
    %v100 = vld [vmem:[#allocation2 + $0xf4] sm:$0xf]
    %v101 = vld [vmem:[#allocation2 + $0xf8] sm:$0xf]
    %v102 = vld [vmem:[#allocation2 + $0xfc] sm:$0xf]
    %v103 = vld [vmem:[#allocation2 + $0x100] sm:$0xf]
    %v104 = vld [vmem:[#allocation2 + $0x104] sm:$0xf]
    %v105 = vld [vmem:[#allocation2 + $0x108] sm:$0xf]
    %v106 = vld [vmem:[#allocation2 + $0x10c] sm:$0xf]
    %v107 = vld [vmem:[#allocation2 + $0x110] sm:$0xf]
    %v108 = vld [vmem:[#allocation2 + $0x114] sm:$0xf]
    %v109 = vld [vmem:[#allocation2 + $0x118] sm:$0xf]
    %v110 = vld [vmem:[#allocation2 + $0x11c] sm:$0xf]
    %v111 = vld [vmem:[#allocation2 + $0x120] sm:$0xf]
    %v112 = vld [vmem:[#allocation2 + $0x124] sm:$0xf]
    %v113 = vld [vmem:[#allocation2 + $0x128] sm:$0xf]
    %v114 = vld [vmem:[#allocation2 + $0x12c] sm:$0xf]
    %v115 = vld [vmem:[#allocation2 + $0x130] sm:$0xf]
    %v116 = vld [vmem:[#allocation2 + $0x134] sm:$0xf]
    %v117 = vld [vmem:[#allocation2 + $0x138] sm:$0xf]
    %v118 = vld [vmem:[#allocation2 + $0x13c] sm:$0xf]
    %v119 = vld [vmem:[#allocation2 + $0x140] sm:$0xf]
    %v120 = vld [vmem:[#allocation2 + $0x144] sm:$0xf]
    %v121 = vld [vmem:[#allocation2 + $0x148] sm:$0xf]
    %v122 = vld [vmem:[#allocation2 + $0x14c] sm:$0xf]
    %v123 = vld [vmem:[#allocation2 + $0x150] sm:$0xf]
    %v124 = vld [vmem:[#allocation2 + $0x154] sm:$0xf]
    %v125 = vld [vmem:[#allocation2 + $0x158] sm:$0xf]
    %v126 = vld [vmem:[#allocation2 + $0x15c] sm:$0xf]
    %v127 = vld [vmem:[#allocation2 + $0x160] sm:$0xf]
    %v128 = vld [vmem:[#allocation2 + $0x164] sm:$0xf]
    %v129 = vld [vmem:[#allocation2 + $0x168] sm:$0xf]
    %v130 = vld [vmem:[#allocation2 + $0x16c] sm:$0xf]
    %v131 = vld [vmem:[#allocation2 + $0x170] sm:$0xf]
    %v132 = vld [vmem:[#allocation2 + $0x174] sm:$0xf]
    %v133 = vld [vmem:[#allocation2 + $0x178] sm:$0xf]
    %v134 = vld [vmem:[#allocation2 + $0x17c] sm:$0xf]
    %v135 = vld [vmem:[#allocation2 + $0x180] sm:$0xf]
    %v136 = vld [vmem:[#allocation2 + $0x184] sm:$0xf]
    %v137 = vld [vmem:[#allocation2 + $0x188] sm:$0xf]
    %v138 = vld [vmem:[#allocation2 + $0x18c] sm:$0xf]
    %v139 = vld [vmem:[#allocation2 + $0x190] sm:$0xf]
    %v140 = vld [vmem:[#allocation2 + $0x194] sm:$0xf]
    %v141 = vld [vmem:[#allocation2 + $0x198] sm:$0xf]
    %v142 = vld [vmem:[#allocation2 + $0x19c] sm:$0xf]
    %v143 = vld [vmem:[#allocation2 + $0x1a0] sm:$0xf]
    %v144 = vld [vmem:[#allocation2 + $0x1a4] sm:$0xf]
    %v145 = vld [vmem:[#allocation2 + $0x1a8] sm:$0xf]
    %v146 = vld [vmem:[#allocation2 + $0x1ac] sm:$0xf]
    %v147 = vld [vmem:[#allocation2 + $0x1b0] sm:$0xf]
    %v148 = vld [vmem:[#allocation2 + $0x1b4] sm:$0xf]
    %v149 = vld [vmem:[#allocation2 + $0x1b8] sm:$0xf]
    %v150 = vld [vmem:[#allocation2 + $0x1bc] sm:$0xf]
    %v151 = vld [vmem:[#allocation2 + $0x1c0] sm:$0xf]
    %v152 = vld [vmem:[#allocation2 + $0x1c4] sm:$0xf]
    %v153 = vld [vmem:[#allocation2 + $0x1c8] sm:$0xf]
    %v154 = vld [vmem:[#allocation2 + $0x1cc] sm:$0xf]
    %v155 = vld [vmem:[#allocation2 + $0x1d0] sm:$0xf]
    %v156 = vld [vmem:[#allocation2 + $0x1d4] sm:$0xf]
    %v157 = vld [vmem:[#allocation2 + $0x1d8] sm:$0xf]
    %v158 = vld [vmem:[#allocation2 + $0x1dc] sm:$0xf]
    %v159 = vld [vmem:[#allocation2 + $0x1e0] sm:$0xf]
    %v160 = vld [vmem:[#allocation2 + $0x1e4] sm:$0xf]
    %v161 = vld [vmem:[#allocation2 + $0x1e8] sm:$0xf]
    %v162 = vld [vmem:[#allocation2 + $0x1ec] sm:$0xf]
    %v163 = vld [vmem:[#allocation2 + $0x1f0] sm:$0xf]
    %v164 = vld [vmem:[#allocation2 + $0x1f4] sm:$0xf]
    %v165 = vld [vmem:[#allocation2 + $0x1f8] sm:$0xf]
    %v166 = vld [vmem:[#allocation2 + $0x1fc] sm:$0xf]
    %v167 = vld [vmem:[%s2] sm:$0x1]
    %v169 = vperm.slane %v167, 0
    %172 = vst [vmem:[#allocation1] ss:$9 sm:$0xff] %v38
    %v173 = vld [vmem:[#allocation1] sm:$0xff]
    %v174 = vld [vmem:[#allocation1 + $0x9] sm:$0xff]
    %v175 = vld [vmem:[#allocation1 + $0x12] sm:$0xff]
    %v176 = vld [vmem:[#allocation1 + $0x1b] sm:$0xff]
    %v177 = vld [vmem:[#allocation1 + $0x24] sm:$0xff]
    %v178 = vld [vmem:[#allocation1 + $0x2d] sm:$0xff]
    %v179 = vld [vmem:[#allocation1 + $0x36] sm:$0xff]
    %v180 = vld [vmem:[#allocation1 + $0x3f] sm:$0xff]
    %v317 = vunpack.c.l.b16 %v39
    %v318 = vunpack.c.l.b16 %v40
    %v319 = vunpack.c.l.b16 %v41
    %v320 = vunpack.c.l.b16 %v42
    %v321 = vunpack.c.l.b16 %v43
    %v322 = vunpack.c.l.b16 %v44
    %v323 = vunpack.c.l.b16 %v45
    %v324 = vunpack.c.l.b16 %v46
    %v325 = vunpack.c.l.b16 %v47
    %v326 = vunpack.c.l.b16 %v48
    %v327 = vunpack.c.l.b16 %v49
    %v328 = vunpack.c.l.b16 %v50
    %v329 = vunpack.c.l.b16 %v51
    %v330 = vunpack.c.l.b16 %v52
    %v331 = vunpack.c.l.b16 %v53
    %v332 = vunpack.c.l.b16 %v54
    %v333 = vunpack.c.l.b16 %v55
    %v334 = vunpack.c.l.b16 %v56
    %v335 = vunpack.c.l.b16 %v57
    %v336 = vunpack.c.l.b16 %v58
    %v337 = vunpack.c.l.b16 %v59
    %v338 = vunpack.c.l.b16 %v60
    %v339 = vunpack.c.l.b16 %v61
    %v340 = vunpack.c.l.b16 %v62
    %v341 = vunpack.c.l.b16 %v63
    %v342 = vunpack.c.l.b16 %v64
    %v343 = vunpack.c.l.b16 %v65
    %v344 = vunpack.c.l.b16 %v66
    %v345 = vunpack.c.l.b16 %v67
    %v346 = vunpack.c.l.b16 %v68
    %v347 = vunpack.c.l.b16 %v69
    %v348 = vunpack.c.l.b16 %v70
    %v349 = vunpack.c.l.b16 %v71
    %v350 = vunpack.c.l.b16 %v72
    %v351 = vunpack.c.l.b16 %v73
    %v352 = vunpack.c.l.b16 %v74
    %v353 = vunpack.c.l.b16 %v75
    %v354 = vunpack.c.l.b16 %v76
    %v355 = vunpack.c.l.b16 %v77
    %v356 = vunpack.c.l.b16 %v78
    %v357 = vunpack.c.l.b16 %v79
    %v358 = vunpack.c.l.b16 %v80
    %v359 = vunpack.c.l.b16 %v81
    %v360 = vunpack.c.l.b16 %v82
    %v361 = vunpack.c.l.b16 %v83
    %v362 = vunpack.c.l.b16 %v84
    %v363 = vunpack.c.l.b16 %v85
    %v364 = vunpack.c.l.b16 %v86
    %v365 = vunpack.c.l.b16 %v87
    %v366 = vunpack.c.l.b16 %v88
    %v367 = vunpack.c.l.b16 %v89
    %v368 = vunpack.c.l.b16 %v90
    %v369 = vunpack.c.l.b16 %v91
    %v370 = vunpack.c.l.b16 %v92
    %v371 = vunpack.c.l.b16 %v93
    %v372 = vunpack.c.l.b16 %v94
    %v373 = vunpack.c.l.b16 %v95
    %v374 = vunpack.c.l.b16 %v96
    %v375 = vunpack.c.l.b16 %v97
    %v376 = vunpack.c.l.b16 %v98
    %v377 = vunpack.c.l.b16 %v99
    %v378 = vunpack.c.l.b16 %v100
    %v379 = vunpack.c.l.b16 %v101
    %v380 = vunpack.c.l.b16 %v102
    %v381 = vunpack.c.l.b16 %v103
    %v382 = vunpack.c.l.b16 %v104
    %v383 = vunpack.c.l.b16 %v105
    %v384 = vunpack.c.l.b16 %v106
    %v385 = vunpack.c.l.b16 %v107
    %v386 = vunpack.c.l.b16 %v108
    %v387 = vunpack.c.l.b16 %v109
    %v388 = vunpack.c.l.b16 %v110
    %v389 = vunpack.c.l.b16 %v111
    %v390 = vunpack.c.l.b16 %v112
    %v391 = vunpack.c.l.b16 %v113
    %v392 = vunpack.c.l.b16 %v114
    %v393 = vunpack.c.l.b16 %v115
    %v394 = vunpack.c.l.b16 %v116
    %v395 = vunpack.c.l.b16 %v117
    %v396 = vunpack.c.l.b16 %v118
    %v397 = vunpack.c.l.b16 %v119
    %v398 = vunpack.c.l.b16 %v120
    %v399 = vunpack.c.l.b16 %v121
    %v400 = vunpack.c.l.b16 %v122
    %v401 = vunpack.c.l.b16 %v123
    %v402 = vunpack.c.l.b16 %v124
    %v403 = vunpack.c.l.b16 %v125
    %v404 = vunpack.c.l.b16 %v126
    %v405 = vunpack.c.l.b16 %v127
    %v406 = vunpack.c.l.b16 %v128
    %v407 = vunpack.c.l.b16 %v129
    %v408 = vunpack.c.l.b16 %v130
    %v409 = vunpack.c.l.b16 %v131
    %v410 = vunpack.c.l.b16 %v132
    %v411 = vunpack.c.l.b16 %v133
    %v412 = vunpack.c.l.b16 %v134
    %v413 = vunpack.c.l.b16 %v135
    %v414 = vunpack.c.l.b16 %v136
    %v415 = vunpack.c.l.b16 %v137
    %v416 = vunpack.c.l.b16 %v138
    %v417 = vunpack.c.l.b16 %v139
    %v418 = vunpack.c.l.b16 %v140
    %v419 = vunpack.c.l.b16 %v141
    %v420 = vunpack.c.l.b16 %v142
    %v421 = vunpack.c.l.b16 %v143
    %v422 = vunpack.c.l.b16 %v144
    %v423 = vunpack.c.l.b16 %v145
    %v424 = vunpack.c.l.b16 %v146
    %v425 = vunpack.c.l.b16 %v147
    %v426 = vunpack.c.l.b16 %v148
    %v427 = vunpack.c.l.b16 %v149
    %v428 = vunpack.c.l.b16 %v150
    %v429 = vunpack.c.l.b16 %v151
    %v430 = vunpack.c.l.b16 %v152
    %v431 = vunpack.c.l.b16 %v153
    %v432 = vunpack.c.l.b16 %v154
    %v433 = vunpack.c.l.b16 %v155
    %v434 = vunpack.c.l.b16 %v156
    %v435 = vunpack.c.l.b16 %v157
    %v436 = vunpack.c.l.b16 %v158
    %v437 = vunpack.c.l.b16 %v159
    %v438 = vunpack.c.l.b16 %v160
    %v439 = vunpack.c.l.b16 %v161
    %v440 = vunpack.c.l.b16 %v162
    %v441 = vunpack.c.l.b16 %v163
    %v442 = vunpack.c.l.b16 %v164
    %v443 = vunpack.c.l.b16 %v165
    %v444 = vunpack.c.l.b16 %v166
    %v445 = vpack.c.b16 %v318, %v317
    %v446 = vpack.c.b16 %v320, %v319
    %v447 = vpack.c.b16 %v322, %v321
    %v448 = vpack.c.b16 %v324, %v323
    %v449 = vpack.c.b16 %v326, %v325
    %v450 = vpack.c.b16 %v328, %v327
    %v451 = vpack.c.b16 %v330, %v329
    %v452 = vpack.c.b16 %v332, %v331
    %v453 = vpack.c.b16 %v334, %v333
    %v454 = vpack.c.b16 %v336, %v335
    %v455 = vpack.c.b16 %v338, %v337
    %v456 = vpack.c.b16 %v340, %v339
    %v457 = vpack.c.b16 %v342, %v341
    %v458 = vpack.c.b16 %v344, %v343
    %v459 = vpack.c.b16 %v346, %v345
    %v460 = vpack.c.b16 %v348, %v347
    %v461 = vpack.c.b16 %v350, %v349
    %v462 = vpack.c.b16 %v352, %v351
    %v463 = vpack.c.b16 %v354, %v353
    %v464 = vpack.c.b16 %v356, %v355
    %v465 = vpack.c.b16 %v358, %v357
    %v466 = vpack.c.b16 %v360, %v359
    %v467 = vpack.c.b16 %v362, %v361
    %v468 = vpack.c.b16 %v364, %v363
    %v469 = vpack.c.b16 %v366, %v365
    %v470 = vpack.c.b16 %v368, %v367
    %v471 = vpack.c.b16 %v370, %v369
    %v472 = vpack.c.b16 %v372, %v371
    %v473 = vpack.c.b16 %v374, %v373
    %v474 = vpack.c.b16 %v376, %v375
    %v475 = vpack.c.b16 %v378, %v377
    %v476 = vpack.c.b16 %v380, %v379
    %v477 = vpack.c.b16 %v382, %v381
    %v478 = vpack.c.b16 %v384, %v383
    %v479 = vpack.c.b16 %v386, %v385
    %v480 = vpack.c.b16 %v388, %v387
    %v481 = vpack.c.b16 %v390, %v389
    %v482 = vpack.c.b16 %v392, %v391
    %v483 = vpack.c.b16 %v394, %v393
    %v484 = vpack.c.b16 %v396, %v395
    %v485 = vpack.c.b16 %v398, %v397
    %v486 = vpack.c.b16 %v400, %v399
    %v487 = vpack.c.b16 %v402, %v401
    %v488 = vpack.c.b16 %v404, %v403
    %v489 = vpack.c.b16 %v406, %v405
    %v490 = vpack.c.b16 %v408, %v407
    %v491 = vpack.c.b16 %v410, %v409
    %v492 = vpack.c.b16 %v412, %v411
    %v493 = vpack.c.b16 %v414, %v413
    %v494 = vpack.c.b16 %v416, %v415
    %v495 = vpack.c.b16 %v418, %v417
    %v496 = vpack.c.b16 %v420, %v419
    %v497 = vpack.c.b16 %v422, %v421
    %v498 = vpack.c.b16 %v424, %v423
    %v499 = vpack.c.b16 %v426, %v425
    %v500 = vpack.c.b16 %v428, %v427
    %v501 = vpack.c.b16 %v430, %v429
    %v502 = vpack.c.b16 %v432, %v431
    %v503 = vpack.c.b16 %v434, %v433
    %v504 = vpack.c.b16 %v436, %v435
    %v505 = vpack.c.b16 %v438, %v437
    %v506 = vpack.c.b16 %v440, %v439
    %v507 = vpack.c.b16 %v442, %v441
    %v508 = vpack.c.b16 %v444, %v443
    %573 = vmatpush.bf16.msra.mxu0 %v452
    %574 = vmatpush.bf16.msra.mxu0 %v451
    %575 = vmatpush.bf16.msra.mxu0 %v450
    %576 = vmatpush.bf16.msra.mxu0 %v449
    %577 = vmatpush.bf16.msra.mxu0 %v448
    %578 = vmatpush.bf16.msra.mxu0 %v447
    %579 = vmatpush.bf16.msra.mxu0 %v446
    %580 = vmatpush.bf16.msra.mxu0 %v445
    %581 = vmatmul.bf16.gmra.mxu0 %v173
    %v582 = vpop.f32.mrf.mxu0
    %v583 = vadd.f32 %v169, %v582
    %v584 = vpop.f32.mrf.mxu0
    %585 = vdwg.mxu0
    %586 = vmatpush.bf16.msra.mxu0 %v460
    %587 = vmatpush.bf16.msra.mxu0 %v459
    %588 = vmatpush.bf16.msra.mxu0 %v458
    %589 = vmatpush.bf16.msra.mxu0 %v457
    %590 = vmatpush.bf16.msra.mxu0 %v456
    %591 = vmatpush.bf16.msra.mxu0 %v455
    %592 = vmatpush.bf16.msra.mxu0 %v454
    %593 = vmatpush.bf16.msra.mxu0 %v453
    %594 = vmatmul.bf16.gmra.mxu0 %v174
    %v595 = vpop.f32.mrf.mxu0
    %v596 = vadd.f32 %v583, %v595
    %v597 = vpop.f32.mrf.mxu0
    %598 = vdwg.mxu0
    %599 = vmatpush.bf16.msra.mxu0 %v468
    %600 = vmatpush.bf16.msra.mxu0 %v467
    %601 = vmatpush.bf16.msra.mxu0 %v466
    %602 = vmatpush.bf16.msra.mxu0 %v465
    %603 = vmatpush.bf16.msra.mxu0 %v464
    %604 = vmatpush.bf16.msra.mxu0 %v463
    %605 = vmatpush.bf16.msra.mxu0 %v462
    %606 = vmatpush.bf16.msra.mxu0 %v461
    %607 = vmatmul.bf16.gmra.mxu0 %v175
    %v608 = vpop.f32.mrf.mxu0
    %v609 = vadd.f32 %v596, %v608
    %v610 = vpop.f32.mrf.mxu0
    %611 = vdwg.mxu0
    %612 = vmatpush.bf16.msra.mxu0 %v476
    %613 = vmatpush.bf16.msra.mxu0 %v475
    %614 = vmatpush.bf16.msra.mxu0 %v474
    %615 = vmatpush.bf16.msra.mxu0 %v473
    %616 = vmatpush.bf16.msra.mxu0 %v472
    %617 = vmatpush.bf16.msra.mxu0 %v471
    %618 = vmatpush.bf16.msra.mxu0 %v470
    %619 = vmatpush.bf16.msra.mxu0 %v469
    %620 = vmatmul.bf16.gmra.mxu0 %v176
    %v621 = vpop.f32.mrf.mxu0
    %v622 = vadd.f32 %v609, %v621
    %v623 = vpop.f32.mrf.mxu0
    %624 = vdwg.mxu0
    %625 = vmatpush.bf16.msra.mxu0 %v484
    %626 = vmatpush.bf16.msra.mxu0 %v483
    %627 = vmatpush.bf16.msra.mxu0 %v482
    %628 = vmatpush.bf16.msra.mxu0 %v481
    %629 = vmatpush.bf16.msra.mxu0 %v480
    %630 = vmatpush.bf16.msra.mxu0 %v479
    %631 = vmatpush.bf16.msra.mxu0 %v478
    %632 = vmatpush.bf16.msra.mxu0 %v477
    %633 = vmatmul.bf16.gmra.mxu0 %v177
    %v634 = vpop.f32.mrf.mxu0
    %v635 = vadd.f32 %v622, %v634
    %v636 = vpop.f32.mrf.mxu0
    %637 = vdwg.mxu0
    %638 = vmatpush.bf16.msra.mxu0 %v492
    %639 = vmatpush.bf16.msra.mxu0 %v491
    %640 = vmatpush.bf16.msra.mxu0 %v490
    %641 = vmatpush.bf16.msra.mxu0 %v489
    %642 = vmatpush.bf16.msra.mxu0 %v488
    %643 = vmatpush.bf16.msra.mxu0 %v487
    %644 = vmatpush.bf16.msra.mxu0 %v486
    %645 = vmatpush.bf16.msra.mxu0 %v485
    %646 = vmatmul.bf16.gmra.mxu0 %v178
    %v647 = vpop.f32.mrf.mxu0
    %v648 = vadd.f32 %v635, %v647
    %v649 = vpop.f32.mrf.mxu0
    %650 = vdwg.mxu0
    %651 = vmatpush.bf16.msra.mxu0 %v500
    %652 = vmatpush.bf16.msra.mxu0 %v499
    %653 = vmatpush.bf16.msra.mxu0 %v498
    %654 = vmatpush.bf16.msra.mxu0 %v497
    %655 = vmatpush.bf16.msra.mxu0 %v496
    %656 = vmatpush.bf16.msra.mxu0 %v495
    %657 = vmatpush.bf16.msra.mxu0 %v494
    %658 = vmatpush.bf16.msra.mxu0 %v493
    %659 = vmatmul.bf16.gmra.mxu0 %v179
    %v660 = vpop.f32.mrf.mxu0
    %v661 = vadd.f32 %v648, %v660
    %v662 = vpop.f32.mrf.mxu0
    %663 = vdwg.mxu0
    %664 = vmatpush.bf16.msra.mxu0 %v508
    %665 = vmatpush.bf16.msra.mxu0 %v507
    %666 = vmatpush.bf16.msra.mxu0 %v506
    %667 = vmatpush.bf16.msra.mxu0 %v505
    %668 = vmatpush.bf16.msra.mxu0 %v504
    %669 = vmatpush.bf16.msra.mxu0 %v503
    %670 = vmatpush.bf16.msra.mxu0 %v502
    %671 = vmatpush.bf16.msra.mxu0 %v501
    %672 = vmatmul.bf16.gmra.mxu0 %v180
    %v673 = vpop.f32.mrf.mxu0
    %v674 = vadd.f32 %v661, %v673
    %v675 = vpop.f32.mrf.mxu0
    %676 = vdwg.mxu0
    %v677 = vmax.f32 %v674, 0.0
    %v678 = vpack.c.bf16 %v677, %v677
    %v679 = vld [vmem:[%s3] sm:$0xf]
    %v680 = vld [vmem:[%s3 + $0x4] sm:$0xf]
    %v681 = vld [vmem:[%s3 + $0x8] sm:$0xf]
    %v682 = vld [vmem:[%s3 + $0xc] sm:$0xf]
    %v683 = vld [vmem:[%s4] sm:$0x1]
    %v685 = vperm.slane %v683, 0
    %v691 = vunpack.c.l.b16 %v679
    %v692 = vunpack.c.l.b16 %v680
    %v693 = vunpack.c.l.b16 %v681
    %v694 = vunpack.c.l.b16 %v682
    %v695 = vpack.c.b16 %v692, %v691
    %v696 = vpack.c.b16 %v694, %v693
    %vm699 = vcmask 261120
    %v701 = vsel %vm699, %v678, 0
    %703 = vmatpush.bf16.msra.mxu0 0
    %704 = vmatpush.bf16.msra.mxu0 0
    %705 = vmatpush.bf16.msra.mxu0 0
    %706 = vmatpush.bf16.msra.mxu0 0
    %707 = vmatpush.bf16.msra.mxu0 0
    %708 = vmatpush.bf16.msra.mxu0 0
    %709 = vmatpush.bf16.msra.mxu0 %v696
    %710 = vmatpush.bf16.msra.mxu0 %v695
    %711 = vmatmul.bf16.gmra.mxu0 %v701
    %v712 = vpop.f32.mrf.mxu0
    %v713 = vadd.f32 %v685, %v712
    %v714 = vpop.f32.mrf.mxu0
    %715 = vdwg.mxu0
    %vm716 = vcmask 74752
    %v717 = vsel %vm716, %v713, -inf
    %718 = vmax.xlane.f32.xlu0 %v717
    %v719 = vpop.xlane.xlu0 %718
    %v720 = vsub.f32 %v713, %v719
    %v721 = vmul.f32 %v720, 1.442695
    %v722 = vpow.pop %v721
    %v723 = vsel %vm716, %v722, 0.0
    %724 = vadd.xlane.f32.xlu0 %v723
    %v725 = vpop.xlane.xlu0 %724
    %v726 = vrcp.pop %v725
    %v727 = vmul.f32 %v722, %v726
    %s728 = scalar_lea.vmem %s3, 16
    %v729 = vld [vmem:[%s728] sm:$0xf]
    %v730 = vld [vmem:[%s728 + $0x4] sm:$0xf]
    %v731 = vld [vmem:[%s728 + $0x8] sm:$0xf]
    %v732 = vld [vmem:[%s728 + $0xc] sm:$0xf]
    %s733 = scalar_lea.vmem %s4, 1
    %v734 = vld [vmem:[%s733] sm:$0x1]
    %v736 = vperm.slane %v734, 0
    %739 = vrot.lane.b32.xlu0 %v678, 96
    %v740 = vpop.permute.xlu0 %739
    %v745 = vunpack.c.l.b16 %v729
    %v746 = vunpack.c.l.b16 %v730
    %v747 = vunpack.c.l.b16 %v731
    %v748 = vunpack.c.l.b16 %v732
    %v749 = vpack.c.b16 %v746, %v745
    %v750 = vpack.c.b16 %v748, %v747
    %v754 = vsel %vm699, %v740, 0
    %756 = vmatpush.bf16.msra.mxu0 0
    %757 = vmatpush.bf16.msra.mxu0 0
    %758 = vmatpush.bf16.msra.mxu0 0
    %759 = vmatpush.bf16.msra.mxu0 0
    %760 = vmatpush.bf16.msra.mxu0 0
    %761 = vmatpush.bf16.msra.mxu0 0
    %762 = vmatpush.bf16.msra.mxu0 %v750
    %763 = vmatpush.bf16.msra.mxu0 %v749
    %764 = vmatmul.bf16.gmra.mxu0 %v754
    %v765 = vpop.f32.mrf.mxu0
    %v766 = vadd.f32 %v736, %v765
    %v767 = vpop.f32.mrf.mxu0
    %768 = vdwg.mxu0
    %v769 = vsel %vm716, %v766, -inf
    %770 = vmax.xlane.f32.xlu0 %v769
    %v771 = vpop.xlane.xlu0 %770
    %v772 = vsub.f32 %v766, %v771
    %v773 = vmul.f32 %v772, 1.442695
    %v774 = vpow.pop %v773
    %v775 = vsel %vm716, %v774, 0.0
    %776 = vadd.xlane.f32.xlu0 %v775
    %v777 = vpop.xlane.xlu0 %776
    %v778 = vrcp.pop %v777
    %v779 = vmul.f32 %v774, %v778
    %v780 = vadd.f32 %v727, %v779
    %s781 = scalar_lea.vmem %s3, 32
    %v782 = vld [vmem:[%s781] sm:$0xf]
    %v783 = vld [vmem:[%s781 + $0x4] sm:$0xf]
    %v784 = vld [vmem:[%s781 + $0x8] sm:$0xf]
    %v785 = vld [vmem:[%s781 + $0xc] sm:$0xf]
    %s786 = scalar_lea.vmem %s4, 2
    %v787 = vld [vmem:[%s786] sm:$0x1]
    %v789 = vperm.slane %v787, 0
    %791 = vrot.lane.b32.xlu0 %v678, 64
    %v792 = vpop.permute.xlu0 %791
    %v797 = vunpack.c.l.b16 %v782
    %v798 = vunpack.c.l.b16 %v783
    %v799 = vunpack.c.l.b16 %v784
    %v800 = vunpack.c.l.b16 %v785
    %v801 = vpack.c.b16 %v798, %v797
    %v802 = vpack.c.b16 %v800, %v799
    %v806 = vsel %vm699, %v792, 0
    %808 = vmatpush.bf16.msra.mxu0 0
    %809 = vmatpush.bf16.msra.mxu0 0
    %810 = vmatpush.bf16.msra.mxu0 0
    %811 = vmatpush.bf16.msra.mxu0 0
    %812 = vmatpush.bf16.msra.mxu0 0
    %813 = vmatpush.bf16.msra.mxu0 0
    %814 = vmatpush.bf16.msra.mxu0 %v802
    %815 = vmatpush.bf16.msra.mxu0 %v801
    %816 = vmatmul.bf16.gmra.mxu0 %v806
    %v817 = vpop.f32.mrf.mxu0
    %v818 = vadd.f32 %v789, %v817
    %v819 = vpop.f32.mrf.mxu0
    %820 = vdwg.mxu0
    %v821 = vsel %vm716, %v818, -inf
    %822 = vmax.xlane.f32.xlu0 %v821
    %v823 = vpop.xlane.xlu0 %822
    %v824 = vsub.f32 %v818, %v823
    %v825 = vmul.f32 %v824, 1.442695
    %v826 = vpow.pop %v825
    %v827 = vsel %vm716, %v826, 0.0
    %828 = vadd.xlane.f32.xlu0 %v827
    %v829 = vpop.xlane.xlu0 %828
    %v830 = vrcp.pop %v829
    %v831 = vmul.f32 %v826, %v830
    %v832 = vadd.f32 %v780, %v831
    %v833 = vmul.f32 %v832, 0.33333334
    %v834 = vmax.f32 %v833, 1.1754944e-38
    %vm835 = vcmp.ge.f32.partialorder %v833, 1.1754944e-38
    %v836 = vlog2.pop %v834
    %v837 = vmul.f32 %v836, 0.6931472
    %v838 = vsel %vm835, %v837, -92.1034
    %839 = vst.msk [vmem:[#allocation5] sm:$0x3] %vm716, %v838
    // Predicated region
    $region26: #{tpu_custom_call.1} parent=1 // pred_check
      _
    $region27: #{tpu_custom_call.1} parent=1 // pred_check_branch
      %841 = sbr.rel (0) target = $region29
    $region28: #{tpu_custom_call.1} parent=1 // pred_region
      %843 = vsyncadd [#allocation4], 0
      %s845 = sshll.u32 [#allocation5], 4
      %s846 = int_to_ptr.vmem [resolvable:$true] %s845
      %s847 = sshll.u32 %s5, 4
      %s848 = int_to_ptr.hbm [resolvable:$true] %s847
      %850 = dma.vmem_to_hbm [thread:$0]  %s846, 32, %s848, [#allocation4]
    $region29: #{tpu_custom_call.1} parent=1 // pred_fallthru
      _
    // Predicated region
    $region30: #{tpu_custom_call.1} parent=1 // pred_check
      _
    $region31: #{tpu_custom_call.1} parent=1 // pred_check_branch
      %852 = sbr.rel (0) target = $region33
    $region32: #{tpu_custom_call.1} parent=1 // pred_region
      %854 = dma.done [#allocation4], 32
    $region33: #{tpu_custom_call.1} parent=1 // pred_fallthru
      _
    %855 = vsyncpa [#allocation3], 1
    %856 = vsyncpa [#allocation4], 1

</llo_original>
